<compile_context>
chip_gen: v5e
topology: v5e:2x2
jax: 0.10.0
libtpu: 0.0.40
codegen_flags: <defaults>
</compile_context>

<pallas_src>
import numpy as np
import jax
import jax.numpy as jnp
from jax import lax
from jax.experimental import pallas as pl
from jax.experimental.pallas import tpu as pltpu


# ----------------------------- tile selection --------------------------------

def _pick_tile_n(N, dim, *, out_bytes=4, vmem_budget_bytes=8 << 20, cap=2048):
    """Largest 128-multiple pixel tile that divides N, capped at 2048 lanes
    (mem-bound tiled writes plateau by ~512-1024 lanes), with the
    double-buffered output tile kept well under v5e's 16 MiB scoped default."""
    max_by_vmem = max(128, vmem_budget_bytes // (dim * out_bytes * 2))
    hi = min(cap, max_by_vmem, N)
    candidates = [t for t in range(128, hi + 1, 128) if N % t == 0]
    if not candidates:
        # Tiny / irregular N: single full-width tile (masked partial stores —
        # a perf, not correctness, concern).
        return N
    return max(candidates)


# ----------------------------- Pallas kernel ---------------------------------

def _make_coord_embed_kernel(S, tile_n):
    """Kernel closure over static img_size S and pixel-tile width."""
    scale = 2.0 / float(S)
    pow2 = (S & (S - 1)) == 0
    shift = S.bit_length() - 1
    mask = S - 1

    def kernel(wx_ref, wy_ref, b_ref, out_ref):
        # wx_ref, wy_ref, b_ref: (dim, 1)  resident across the whole grid
        # out_ref:               (1, dim, tile_n)  one batch slice, lane-dense
        i = pl.program_id(1)

        # Flat pixel indices for this tile (lane axis), generated in-register.
        idx = lax.broadcasted_iota(jnp.int32, (1, tile_n), 1) + i * tile_n
        if pow2:
            row = idx >> shift          # shift/and — no i32 divide on the VPU
            col = idx & mask
        else:
            row = idx // S              # amortized over dim; small VALU cost
            col = idx - row * S
        x = col.astype(jnp.float32) * scale - 1.0   # (1, tile_n) in [-1, 1)
        y = row.astype(jnp.float32) * scale - 1.0

        # Degenerate K=2 contraction as VPU broadcast-FMAs (no MXU).
        z = wx_ref[...] * x + (wy_ref[...] * y + b_ref[...])   # (dim, tile_n)

        # jnp.sin kept exact: a bounded-domain polynomial only holds for the
        # init-time |z| bound, not for trained weights.
        out_ref[...] = jnp.sin(z)[None].astype(out_ref.dtype)

    return kernel


# ------------------------------- wrapper --------------------------------------

def coordinates_input_forward(weight, bias, batch_size, img_size, *,
                              tile_n=None, out_dtype=jnp.float32):
    """Pallas implementation of CoordinatesInput.forward.

    weight: (dim, 2) float32 (PyTorch Linear layout), bias: (dim,) float32.
    Returns (batch_size, dim, img_size, img_size) in `out_dtype` (NCHW).
    """
    dim = int(weight.shape[0])
    S = int(img_size)
    N = S * S
    B = int(batch_size)

    if tile_n is None:
        tile_n = _pick_tile_n(N, dim, out_bytes=jnp.dtype(out_dtype).itemsize)
    assert N % tile_n == 0, "tile_n must divide img_size**2"

    # Pre-split the Linear weight so each operand is a clean (dim, 1) broadcast
    # source (no lane-padded (dim, 2) tile, no in-kernel lane slicing).
    wx = weight[:, 0:1]
    wy = weight[:, 1:2]
    bias_col = bias.reshape(dim, 1)

    grid = (B, N // tile_n)

    embs = pl.pallas_call(
        _make_coord_embed_kernel(S, tile_n),
        out_shape=jax.ShapeDtypeStruct((B, dim, N), out_dtype),
        grid_spec=pltpu.PrefetchScalarGridSpec(
            num_scalar_prefetch=0,
            grid=grid,
            in_specs=[
                pl.BlockSpec((dim, 1), lambda b, i: (0, 0)),   # wx, resident
                pl.BlockSpec((dim, 1), lambda b, i: (0, 0)),   # wy, resident
                pl.BlockSpec((dim, 1), lambda b, i: (0, 0)),   # bias, resident
            ],
            # Batched, lane-dense output slab — no wrapper broadcast_to.
            out_specs=pl.BlockSpec((1, dim, tile_n), lambda b, i: (b, 0, i)),
        ),
        compiler_params=pltpu.CompilerParams(
            dimension_semantics=("parallel", "parallel"),
        ),
    )(wx, wy, bias_col)

    # Pure metadata reshape: (B, dim, N) -> (B, dim, S, S), NCHW like PyTorch.
    return embs.reshape(B, dim, S, S)


# ----------------------------- reference (pure JAX) ---------------------------

def _reference(weight, bias, batch_size, img_size):
    S = img_size
    row = jnp.arange(S, dtype=jnp.float32) / S * 2.0 - 1.0
    x_coords = jnp.tile(row[None, :], (S, 1))
    y_coords = x_coords.T
    coords = jnp.stack([x_coords, y_coords], axis=2).reshape(-1, 2)   # (N, 2)
    embs = jnp.sin(coords @ weight.T + bias[None, :])                 # (N, dim)
    embs = embs.T.reshape(weight.shape[0], S, S)
    return jnp.broadcast_to(embs[None, ...], (batch_size,) + embs.shape)


# ----------------------------------- main --------------------------------------

if __name__ == "__main__":
    dim = 32
    img_size = 16
    batch_size = 2

    # Deterministic init matching nn.init.uniform_(-sqrt(9/dim), sqrt(9/dim)),
    # bias zeroed (as in the module's __init__).
    key = jax.random.PRNGKey(0)
    bound = float(np.sqrt(9.0 / dim))
    weight = jax.random.uniform(key, (dim, 2), dtype=jnp.float32,
                                minval=-bound, maxval=bound)
    bias = jnp.zeros((dim,), dtype=jnp.float32)

    out = coordinates_input_forward(weight, bias, batch_size, img_size)
    out = jax.block_until_ready(out)

    ref = _reference(weight, bias, batch_size, img_size)
    assert out.shape == (batch_size, dim, img_size, img_size), out.shape
    np.testing.assert_allclose(np.asarray(out), np.asarray(ref), rtol=1e-5, atol=1e-5)

    print("KERNEL_OK")
</pallas_src>

<mosaic_0001>
module attributes {stable_mosaic.version = 11 : i64} {
  func.func @kernel(%arg0: i32, %arg1: i32, %arg2: memref<32x1xf32, #tpu.memory_space<vmem>>, %arg3: memref<32x1xf32, #tpu.memory_space<vmem>>, %arg4: memref<32x1xf32, #tpu.memory_space<vmem>>, %arg5: memref<1x32x256xf32, #tpu.memory_space<vmem>>) attributes {dimension_semantics = [#tpu.dimension_semantics<parallel>, #tpu.dimension_semantics<parallel>], iteration_bounds = array<i64: 2, 1>, scalar_prefetch = 0 : i64, scratch_operands = 0 : i64, tpu.core_type = #tpu.core_type<tc>, window_params = [{pipeline_mode = #tpu.pipeline_mode<synchronous>, transform_indices = @transform_0, window_bounds = array<i64: 32, 1>}, {pipeline_mode = #tpu.pipeline_mode<synchronous>, transform_indices = @transform_1, window_bounds = array<i64: 32, 1>}, {pipeline_mode = #tpu.pipeline_mode<synchronous>, transform_indices = @transform_2, window_bounds = array<i64: 32, 1>}, {transform_indices = @transform_3, window_bounds = array<i64: 1, 32, 256>}]} {
    %0 = tpu.iota {dimensions = array<i32: 1>} : vector<1x256xi32>
    %c256_i32 = arith.constant 256 : i32
    %1 = arith.muli %arg1, %c256_i32 : i32
    %2 = vector.broadcast %1 : i32 to vector<1x256xi32>
    %3 = arith.addi %0, %2 : vector<1x256xi32>
    %c4_i32 = arith.constant 4 : i32
    %4 = vector.broadcast %c4_i32 : i32 to vector<1x256xi32>
    %5 = arith.shrsi %3, %4 : vector<1x256xi32>
    %c15_i32 = arith.constant 15 : i32
    %6 = vector.broadcast %c15_i32 : i32 to vector<1x256xi32>
    %7 = arith.andi %3, %6 : vector<1x256xi32>
    %8 = arith.sitofp %7 : vector<1x256xi32> to vector<1x256xf32>
    %cst = arith.constant 1.250000e-01 : f32
    %9 = vector.broadcast %cst : f32 to vector<1x256xf32>
    %10 = arith.mulf %8, %9 : vector<1x256xf32>
    %cst_0 = arith.constant 1.000000e+00 : f32
    %11 = vector.broadcast %cst_0 : f32 to vector<1x256xf32>
    %12 = arith.subf %10, %11 : vector<1x256xf32>
    %13 = arith.sitofp %5 : vector<1x256xi32> to vector<1x256xf32>
    %cst_1 = arith.constant 1.250000e-01 : f32
    %14 = vector.broadcast %cst_1 : f32 to vector<1x256xf32>
    %15 = arith.mulf %13, %14 : vector<1x256xf32>
    %cst_2 = arith.constant 1.000000e+00 : f32
    %16 = vector.broadcast %cst_2 : f32 to vector<1x256xf32>
    %17 = arith.subf %15, %16 : vector<1x256xf32>
    %c0 = arith.constant 0 : index
    %c0_3 = arith.constant 0 : index
    %18 = vector.load %arg2[%c0, %c0_3] : memref<32x1xf32, #tpu.memory_space<vmem>>, vector<32x1xf32>
    %19 = vector.broadcast %18 : vector<32x1xf32> to vector<32x256xf32>
    %20 = vector.broadcast %12 : vector<1x256xf32> to vector<32x256xf32>
    %21 = arith.mulf %19, %20 : vector<32x256xf32>
    %c0_4 = arith.constant 0 : index
    %c0_5 = arith.constant 0 : index
    %22 = vector.load %arg3[%c0_4, %c0_5] : memref<32x1xf32, #tpu.memory_space<vmem>>, vector<32x1xf32>
    %23 = vector.broadcast %22 : vector<32x1xf32> to vector<32x256xf32>
    %24 = vector.broadcast %17 : vector<1x256xf32> to vector<32x256xf32>
    %25 = arith.mulf %23, %24 : vector<32x256xf32>
    %c0_6 = arith.constant 0 : index
    %c0_7 = arith.constant 0 : index
    %26 = vector.load %arg4[%c0_6, %c0_7] : memref<32x1xf32, #tpu.memory_space<vmem>>, vector<32x1xf32>
    %27 = vector.broadcast %26 : vector<32x1xf32> to vector<32x256xf32>
    %28 = arith.addf %25, %27 : vector<32x256xf32>
    %29 = arith.addf %21, %28 : vector<32x256xf32>
    %30 = math.sin %29 : vector<32x256xf32>
    %31 = vector.shape_cast %30 : vector<32x256xf32> to vector<1x32x256xf32>
    %c0_8 = arith.constant 0 : index
    %c0_9 = arith.constant 0 : index
    %c0_10 = arith.constant 0 : index
    %32 = vector.load %arg5[%c0_8, %c0_9, %c0_10] : memref<1x32x256xf32, #tpu.memory_space<vmem>>, vector<1x32x256xf32>
    tpu.vector_store %arg5[%c0_8, %c0_9, %c0_10], %31 {strides = array<i32>} : memref<1x32x256xf32, #tpu.memory_space<vmem>>, vector<1x32x256xf32>,
    return
  }
  func.func @transform_0(%arg0: i32, %arg1: i32) -> (i32, i32) {
    %c0_i32 = arith.constant 0 : i32
    %c0_i32_0 = arith.constant 0 : i32
    %c0_i32_1 = arith.constant 0 : i32
    return %c0_i32, %c0_i32_0 : i32, i32
  }
  func.func @transform_1(%arg0: i32, %arg1: i32) -> (i32, i32) {
    %c0_i32 = arith.constant 0 : i32
    %c0_i32_0 = arith.constant 0 : i32
    %c0_i32_1 = arith.constant 0 : i32
    return %c0_i32, %c0_i32_0 : i32, i32
  }
  func.func @transform_2(%arg0: i32, %arg1: i32) -> (i32, i32) {
    %c0_i32 = arith.constant 0 : i32
    %c0_i32_0 = arith.constant 0 : i32
    %c0_i32_1 = arith.constant 0 : i32
    return %c0_i32, %c0_i32_0 : i32, i32
  }
  func.func @transform_3(%arg0: i32, %arg1: i32) -> (i32, i32, i32) {
    %c0_i32 = arith.constant 0 : i32
    %c0_i32_0 = arith.constant 0 : i32
    return %arg0, %c0_i32, %arg1 : i32, i32, i32
  }
}

</mosaic_0001>

<llo_original>
// kernel: tpu_custom_call.1
$region0: #{tpu_custom_call.1}
  #allocation0 [shape = 'u32[]', space=smem, size = 0x4, offset = 0x4, fixed_abs, tag = 'smem constant byte address 0x4 - core index']
  #allocation1 [shape = 'u32[72,128]{1,0:T(1,128)}', space=vmem, size = 0x9000, scoped, tag = 'internal scratch']
  %s0 = inlined_call_operand.vmem [shape: f32[32,1], index: 0, kind: input, shape index: {}]
  %s1 = inlined_call_operand.vmem [shape: f32[32,1], index: 1, kind: input, shape index: {}]
  %s2 = inlined_call_operand.vmem [shape: f32[32,1], index: 2, kind: input, shape index: {}]
  %s3 = inlined_call_operand.hbm [shape: f32[2,32,256], index: 3, kind: output, shape index: {}]
  %s4 = sld [smem:[#allocation0]]
  $region45: #{tpu_custom_call.1} parent=0
    _
  %s6 = ssub.s32 1, %s4
  %s7 = scalar_select 0, %s6, %s4
  $region1: #{tpu_custom_call.1} parent=0
    #allocation2 [shape = 'u8[65536]{0}', space=vmem, size = 0x10000, scoped, tag = 'output window, operand 0']
    #allocation3 [shape = 's32[2]{0}', space=sflag, size = 0x8, scoped, tag = 'scoped memory for tpu_custom_call.1']
    %8 = vsyncpa [#allocation3], 0
    %s9 = scalar_lea.sflag [#allocation3], 1
    %10 = vsyncpa %s9, 0
    loop: start=0, step=1, limit=4
    $region2: #{tpu_custom_call.1} parent=1 // loop_pre_header
      _
    $region3: #{tpu_custom_call.1} parent=1 // loop_header
      %s12 = sphi 0, %s16
      %p13 = scmp.ge.s32.totalorder %s12, 4
      %s19 = sphi 0, %s31
      %s20 = sphi 0, %s27
      %s21 = sphi 0, %s19
      %s22 = sphi 0, %s20
      %s23 = sphi 0, %s21
      %s24 = sphi 0, %s22
      %s32 = sphi 0, %s32
      %s34 = sphi 0, %s32
      %s35 = sphi 0, %s34
      %s49 = sphi 0, %s35
      %s53 = sphi 0, %s53
      %s55 = sphi 0, %s53
      %s56 = sphi 0, %s55
      %s70 = sphi 0, %s56
      %s74 = sphi 0, %s74
      %s76 = sphi 0, %s74
      %s77 = sphi 0, %s76
      %s91 = sphi 0, %s77
      %s99 = sphi 0, %s101
      %s102 = sphi 0, %s99
      %s103 = sphi 0, %s102
      %s119 = sphi 0, %s103
    $region4: #{tpu_custom_call.1} parent=1 // loop_header_branch
      %15 = sbr.rel (%p13) target = $region8
    $region5: #{tpu_custom_call.1} parent=1 // loop_body
      %s17 = ssub.s32 %s12, 1
      %s18 = ssub.s32 %s12, 2
      %s25 = sadd.s32 1, %s20
      %p26 = scmp.ge.s32.totalorder %s25, 1
      %s27 = scalar_select %p26, 0, %s25
      %s28 = sadd.s32 1, %s19
      %s29 = scalar_select %p26, %s28, %s19
      %p30 = scmp.ge.s32.totalorder %s29, 2
      %s31 = scalar_select %p30, 0, %s29
      %s33 = sadd.s32 %s32, 1
      %p36 = scmp.eq.s32.totalorder %s12, 1
      %p37 = scmp.ne.s32.totalorder %s32, %s34
      %p38 = scmp.eq.s32.totalorder %s12, 0
      %p39 = por %p37, %p38
      %p40 = scmp.ne.s32.totalorder %s32, %s34
      %p41 = scmp.eq.s32.totalorder %s17, 1
      %p42 = por %p40, %p41
      %p43 = scmp.ne.s32.totalorder %s34, %s35
      %p44 = scmp.eq.s32.totalorder %s17, 0
      %p45 = por %p43, %p44
      %p46 = scmp.ne.s32.totalorder %s34, %s35
      %p47 = scmp.eq.s32.totalorder %s18, 1
      %p48 = por %p46, %p47
      %p50 = scmp.ne.s32.totalorder %s35, %s49
      %p51 = scmp.eq.s32.totalorder %s18, 0
      %p52 = por %p50, %p51
      %s54 = sadd.s32 %s53, 1
      %p57 = scmp.eq.s32.totalorder %s12, 1
      %p58 = scmp.ne.s32.totalorder %s53, %s55
      %p59 = scmp.eq.s32.totalorder %s12, 0
      %p60 = por %p58, %p59
      %p61 = scmp.ne.s32.totalorder %s53, %s55
      %p62 = scmp.eq.s32.totalorder %s17, 1
      %p63 = por %p61, %p62
      %p64 = scmp.ne.s32.totalorder %s55, %s56
      %p65 = scmp.eq.s32.totalorder %s17, 0
      %p66 = por %p64, %p65
      %p67 = scmp.ne.s32.totalorder %s55, %s56
      %p68 = scmp.eq.s32.totalorder %s18, 1
      %p69 = por %p67, %p68
      %p71 = scmp.ne.s32.totalorder %s56, %s70
      %p72 = scmp.eq.s32.totalorder %s18, 0
      %p73 = por %p71, %p72
      %s75 = sadd.s32 %s74, 1
      %p78 = scmp.eq.s32.totalorder %s12, 1
      %p79 = scmp.ne.s32.totalorder %s74, %s76
      %p80 = scmp.eq.s32.totalorder %s12, 0
      %p81 = por %p79, %p80
      %p82 = scmp.ne.s32.totalorder %s74, %s76
      %p83 = scmp.eq.s32.totalorder %s17, 1
      %p84 = por %p82, %p83
      %p85 = scmp.ne.s32.totalorder %s76, %s77
      %p86 = scmp.eq.s32.totalorder %s17, 0
      %p87 = por %p85, %p86
      %p88 = scmp.ne.s32.totalorder %s76, %s77
      %p89 = scmp.eq.s32.totalorder %s18, 1
      %p90 = por %p88, %p89
      %p92 = scmp.ne.s32.totalorder %s77, %s91
      %p93 = scmp.eq.s32.totalorder %s18, 0
      %p94 = por %p92, %p93
      %s95 = ssub.s32 %s19, %s31
      %s96 = ssub.s32 %s20, %s27
      %s97 = sor.u32 %s95, %s96
      %p98 = scmp.eq.s32.totalorder %s97, 0
      %s100 = sadd.s32 %s99, 1
      %s101 = scalar_select %p98, %s99, %s100
      %p104 = pneg %p98
      %p105 = scmp.eq.s32.totalorder %s12, 1
      %p106 = por %p104, %p105
      %p107 = scmp.ne.s32.totalorder %s99, %s102
      %p108 = scmp.eq.s32.totalorder %s12, 0
      %p109 = por %p107, %p108
      %p110 = scmp.ne.s32.totalorder %s99, %s102
      %p111 = scmp.eq.s32.totalorder %s17, 1
      %p112 = por %p110, %p111
      %p113 = scmp.ne.s32.totalorder %s102, %s103
      %p114 = scmp.eq.s32.totalorder %s17, 0
      %p115 = por %p113, %p114
      %p116 = scmp.ne.s32.totalorder %s102, %s103
      %p117 = scmp.eq.s32.totalorder %s18, 1
      %p118 = por %p116, %p117
      %p120 = scmp.ne.s32.totalorder %s103, %s119
      %p121 = scmp.eq.s32.totalorder %s18, 0
      %p122 = por %p120, %p121
      %p123 = scmp.le.s32.totalorder 1, %s12
      %p124 = scmp.lt.s32.totalorder %s12, 3
      %p125 = pnand %p123, %p124
      %p126 = pneg %p125
      // Predicated region
      $region9: #{tpu_custom_call.1} parent=5 // pred_check
        _
      $region10: #{tpu_custom_call.1} parent=5 // pred_check_branch
        %128 = sbr.rel (%p125) target = $region12
      $region11: #{tpu_custom_call.1} parent=5 // pred_region
        %s129 = ssub.s32 %s12, 1
        // Predicated region
        $region13: #{tpu_custom_call.1} parent=11 // pred_check
          %p130 = pneg %p45
        $region14: #{tpu_custom_call.1} parent=11 // pred_check_branch
          %132 = sbr.rel (%p130) target = $region16
        $region15: #{tpu_custom_call.1} parent=11 // pred_region
          _
        $region16: #{tpu_custom_call.1} parent=11 // pred_fallthru
          _
        // Predicated region
        $region17: #{tpu_custom_call.1} parent=11 // pred_check
          %p133 = pneg %p66
        $region18: #{tpu_custom_call.1} parent=11 // pred_check_branch
          %135 = sbr.rel (%p133) target = $region20
        $region19: #{tpu_custom_call.1} parent=11 // pred_region
          _
        $region20: #{tpu_custom_call.1} parent=11 // pred_fallthru
          _
        // Predicated region
        $region21: #{tpu_custom_call.1} parent=11 // pred_check
          %p136 = pneg %p87
        $region22: #{tpu_custom_call.1} parent=11 // pred_check_branch
          %138 = sbr.rel (%p136) target = $region24
        $region23: #{tpu_custom_call.1} parent=11 // pred_region
          _
        $region24: #{tpu_custom_call.1} parent=11 // pred_fallthru
          _
      $region12: #{tpu_custom_call.1} parent=5 // pred_fallthru
        _
      %p139 = scmp.lt.s32.totalorder %s12, 2
      // Predicated region
      $region25: #{tpu_custom_call.1} parent=5 // pred_check
        %p140 = pneg %p139
      $region26: #{tpu_custom_call.1} parent=5 // pred_check_branch
        %142 = sbr.rel (%p140) target = $region28
      $region27: #{tpu_custom_call.1} parent=5 // pred_region
        _
      $region28: #{tpu_custom_call.1} parent=5 // pred_fallthru
        _
      %p143 = scmp.le.s32.totalorder 1, %s12
      %p144 = scmp.lt.s32.totalorder %s12, 3
      %p145 = pnand %p143, %p144
      %p146 = pneg %p145
      // Predicated region
      $region29: #{tpu_custom_call.1} parent=5 // pred_check
        _
      $region30: #{tpu_custom_call.1} parent=5 // pred_check_branch
        %148 = sbr.rel (%p145) target = $region32
      $region31: #{tpu_custom_call.1} parent=5 // pred_region
        %s149 = ssub.s32 %s12, 1
        %p150 = pneg %p45
        %p151 = pneg %p42
        %p152 = pneg %p66
        %p153 = pneg %p63
        %p154 = pneg %p87
        %p155 = pneg %p84
        %p156 = pneg %p115
        %p157 = pneg %p112
        %s158 = sand.u32 %s102, 1
        %s159 = scalar_lea.sflag [#allocation3], %s158
        %s160 = sand.u32 %s102, 1
        %s161 = smul.addr %s160, 64
        %s162 = scalar_lea.vmem [#allocation2], %s161
        %s163 = smul.u32 2, %s22
        %v164 = vlaneseq
        %v165 = vand.u32 %v164, 127
        %v166 = vadd.s32 %v165, 128
        %s167 = smul.u32 %s22, 256
        %v168 = vstv %s167
        %v169 = vadd.s32 %v165, %v168
        %v170 = vadd.s32 %v166, %v168
        %v171 = vshra.s32 %v169, 4
        %v172 = vshra.s32 %v170, 4
        %v173 = vand.u32 %v169, 15
        %v174 = vand.u32 %v170, 15
        %v175 = vcvt.s32.f32 %v173
        %v176 = vcvt.s32.f32 %v174
        %v177 = vmul.f32 %v175, 0.125
        %v178 = vmul.f32 %v176, 0.125
        %v179 = vsub.f32 %v177, 1.0
        %v180 = vsub.f32 %v178, 1.0
        %v181 = vcvt.s32.f32 %v171
        %v182 = vcvt.s32.f32 %v172
        %v183 = vmul.f32 %v181, 0.125
        %v184 = vmul.f32 %v182, 0.125
        %v185 = vsub.f32 %v183, 1.0
        %v186 = vsub.f32 %v184, 1.0
        %v187 = vld [vmem:[%s0] sm:$0xff]
        %v188 = vld [vmem:[%s0 + $0x8] sm:$0xff]
        %v189 = vld [vmem:[%s0 + $0x10] sm:$0xff]
        %v190 = vld [vmem:[%s0 + $0x18] sm:$0xff]
        %192 = vset.pattern.permute.xlu0 0
        %193 = vperm.xlu0 %192, %v187
        %v194 = vpop.permute.xlu0 %193
        %197 = vset.pattern.permute.xlu0 0
        %198 = vperm.xlu0 %197, %v188
        %v199 = vpop.permute.xlu0 %198
        %202 = vset.pattern.permute.xlu0 0
        %203 = vperm.xlu0 %202, %v189
        %v204 = vpop.permute.xlu0 %203
        %207 = vset.pattern.permute.xlu0 0
        %208 = vperm.xlu0 %207, %v190
        %v209 = vpop.permute.xlu0 %208
        %v211 = vmul.f32 %v194, %v179
        %v212 = vmul.f32 %v194, %v180
        %v213 = vmul.f32 %v199, %v179
        %v214 = vmul.f32 %v199, %v180
        %v215 = vmul.f32 %v204, %v179
        %v216 = vmul.f32 %v204, %v180
        %v217 = vmul.f32 %v209, %v179
        %v218 = vmul.f32 %v209, %v180
        %v219 = vld [vmem:[%s1] sm:$0xff]
        %v220 = vld [vmem:[%s1 + $0x8] sm:$0xff]
        %v221 = vld [vmem:[%s1 + $0x10] sm:$0xff]
        %v222 = vld [vmem:[%s1 + $0x18] sm:$0xff]
        %224 = vset.pattern.permute.xlu0 0
        %225 = vperm.xlu0 %224, %v219
        %v226 = vpop.permute.xlu0 %225
        %229 = vset.pattern.permute.xlu0 0
        %230 = vperm.xlu0 %229, %v220
        %v231 = vpop.permute.xlu0 %230
        %234 = vset.pattern.permute.xlu0 0
        %235 = vperm.xlu0 %234, %v221
        %v236 = vpop.permute.xlu0 %235
        %239 = vset.pattern.permute.xlu0 0
        %240 = vperm.xlu0 %239, %v222
        %v241 = vpop.permute.xlu0 %240
        %v243 = vmul.f32 %v226, %v185
        %v244 = vmul.f32 %v226, %v186
        %v245 = vmul.f32 %v231, %v185
        %v246 = vmul.f32 %v231, %v186
        %v247 = vmul.f32 %v236, %v185
        %v248 = vmul.f32 %v236, %v186
        %v249 = vmul.f32 %v241, %v185
        %v250 = vmul.f32 %v241, %v186
        %v251 = vld [vmem:[%s2] sm:$0xff]
        %v252 = vld [vmem:[%s2 + $0x8] sm:$0xff]
        %v253 = vld [vmem:[%s2 + $0x10] sm:$0xff]
        %v254 = vld [vmem:[%s2 + $0x18] sm:$0xff]
        %256 = vset.pattern.permute.xlu0 0
        %257 = vperm.xlu0 %256, %v251
        %v258 = vpop.permute.xlu0 %257
        %261 = vset.pattern.permute.xlu0 0
        %262 = vperm.xlu0 %261, %v252
        %v263 = vpop.permute.xlu0 %262
        %266 = vset.pattern.permute.xlu0 0
        %267 = vperm.xlu0 %266, %v253
        %v268 = vpop.permute.xlu0 %267
        %271 = vset.pattern.permute.xlu0 0
        %272 = vperm.xlu0 %271, %v254
        %v273 = vpop.permute.xlu0 %272
        %v275 = vadd.f32 %v243, %v258
        %v276 = vadd.f32 %v244, %v258
        %v277 = vadd.f32 %v245, %v263
        %v278 = vadd.f32 %v246, %v263
        %v279 = vadd.f32 %v247, %v268
        %v280 = vadd.f32 %v248, %v268
        %v281 = vadd.f32 %v249, %v273
        %v282 = vadd.f32 %v250, %v273
        %v283 = vadd.f32 %v211, %v275
        %v284 = vadd.f32 %v212, %v276
        %v285 = vadd.f32 %v213, %v277
        %v286 = vadd.f32 %v214, %v278
        %v287 = vadd.f32 %v215, %v279
        %v288 = vadd.f32 %v216, %v280
        %v289 = vadd.f32 %v217, %v281
        %v290 = vadd.f32 %v218, %v282
        %v291 = vand.u32 2147483647, %v283
        %vm292 = vcmp.le.f32.partialorder %v291, 0.7853982
        %vm293 = vcmp.lt.s32.totalorder %v283, 0
        %v294 = vand.u32 %v283, 2139095040
        %v295 = vshrl.u32 %v294, 23
        %v296 = vsub.s32 %v295, 127
        %v297 = vand.u32 2147483647, %v283
        %v298 = vand.u32 %v297, 8388607
        %v299 = vor.u32 %v298, 8388608
        %v300 = vsub.s32 0, %v299
        %v301 = vadd.s32 %v296, 1
        %vm302 = vcmp.gt.s32.totalorder %v301, 0
        %v303 = vsel %vm302, %v301, 0
        %v304 = vshrl.u32 %v303, 5
        %v305 = vand.u32 %v303, 31
        %v306 = vsub.s32 32, %v305
        %v307 = vshrl.u32 683565275, %v306
        %v308 = vshll.u32 683565275, %v305
        %v309 = vshrl.u32 2475754826, %v306
        %v310 = vor.u32 %v308, %v309
        %v311 = vshll.u32 2475754826, %v305
        %v312 = vshrl.u32 2131351028, %v306
        %v313 = vor.u32 %v311, %v312
        %v314 = vshll.u32 2131351028, %v305
        %v315 = vshrl.u32 2102212464, %v306
        %v316 = vor.u32 %v314, %v315
        %v317 = vshll.u32 2102212464, %v305
        %v318 = vshrl.u32 920167782, %v306
        %v319 = vor.u32 %v317, %v318
        %v320 = vshll.u32 920167782, %v305
        %v321 = vshrl.u32 1326507024, %v306
        %v322 = vor.u32 %v320, %v321
        %vm323 = vcmp.lt.s32.totalorder %v304, 1
        %vm324 = vcmp.lt.s32.totalorder %v304, 2
        %vm325 = vcmp.lt.s32.totalorder %v304, 3
        %vm326 = vcmp.lt.s32.totalorder %v304, 4
        %v327 = vsel %vm323, %v307, %v310
        %v328 = vsel %vm326, %v316, 2102212464
        %v329 = vsel %vm325, %v313, %v328
        %v330 = vsel %vm324, %v327, %v329
        %v331 = vsel %vm323, %v310, %v313
        %v332 = vsel %vm326, %v319, 920167782
        %v333 = vsel %vm325, %v316, %v332
        %v334 = vsel %vm324, %v331, %v333
        %v335 = vsel %vm323, %v313, %v316
        %v336 = vsel %vm326, %v322, 1326507024
        %v337 = vsel %vm325, %v319, %v336
        %v338 = vsel %vm324, %v335, %v337
        %v339 = vshll.u32 %v299, 8
        %v340 = vand.u32 %v339, 65535
        %v341 = vshrl.u32 %v339, 16
        %v342 = vand.u32 %v338, 65535
        %v343 = vshrl.u32 %v338, 16
        %v344 = vmul.u32 %v340, %v342
        %v345 = vmul.u32 %v340, %v343
        %v346 = vmul.u32 %v341, %v342
        %v347 = vmul.u32 %v341, %v343
        %v348 = vshll.u32 %v345, 16
        %v349 = vshrl.u32 %v345, 16
        %v350 = vshll.u32 %v346, 16
        %v351 = vshrl.u32 %v346, 16
        %vm352 = vc.u32 %v344, %v348
        %v353 = vsel %vm352, 1, 0
        %v354 = vadd.s32 %v344, %v348
        %v355 = vadd.s32 %v347, %v353
        %vm356 = vc.u32 %v354, %v350
        %v357 = vsel %vm356, 1, 0
        %v358 = vadd.s32 %v354, %v350
        %v359 = vadd.s32 %v355, %v357
        %v360 = vadd.s32 %v359, %v349
        %v361 = vadd.s32 %v360, %v351
        %v362 = vand.u32 %v339, 65535
        %v363 = vshrl.u32 %v339, 16
        %v364 = vand.u32 %v334, 65535
        %v365 = vshrl.u32 %v334, 16
        %v366 = vmul.u32 %v362, %v364
        %v367 = vmul.u32 %v362, %v365
        %v368 = vmul.u32 %v363, %v364
        %v369 = vmul.u32 %v363, %v365
        %v370 = vshll.u32 %v367, 16
        %v371 = vshrl.u32 %v367, 16
        %v372 = vshll.u32 %v368, 16
        %v373 = vshrl.u32 %v368, 16
        %vm374 = vc.u32 %v366, %v370
        %v375 = vsel %vm374, 1, 0
        %v376 = vadd.s32 %v366, %v370
        %v377 = vadd.s32 %v369, %v375
        %vm378 = vc.u32 %v376, %v372
        %v379 = vsel %vm378, 1, 0
        %v380 = vadd.s32 %v376, %v372
        %v381 = vadd.s32 %v377, %v379
        %v382 = vadd.s32 %v381, %v371
        %v383 = vadd.s32 %v382, %v373
        %v384 = vmul.u32 %v339, %v330
        %v385 = vadd.s32 %v361, %v380
        %vm386 = vc.u32 %v361, %v380
        %v387 = vadd.s32 %v383, 1
        %v388 = vsel %vm386, %v387, %v383
        %v389 = vadd.s32 %v384, %v388
        %v390 = vadd.s32 %v389, 536870912
        %v391 = vshrl.u32 %v390, 30
        %v392 = vshll.u32 %v391, 30
        %v393 = vsub.s32 %v389, %v392
        %vm394 = vcmp.lt.s32.totalorder %v393, 0
        %v395 = vsub.s32 0, %v393
        %v396 = vsel %vm394, %v395, %v393
        %v397 = vclz %v396
        %v398 = vsub.s32 %v397, 2
        %vm399 = vcmp.gt.s32.totalorder 0, %v398
        %v400 = vsel %vm399, 0, %v398
        %v401 = vsub.s32 32, %v400
        %v402 = vshll.u32 %v393, %v400
        %v403 = vshrl.u32 %v385, %v401
        %v404 = vor.u32 %v402, %v403
        %v405 = vsub.s32 4294967266, %v400
        %v406 = vadd.s32 %v405, 127
        %v407 = vshll.u32 %v406, 23
        %v408 = vor.u32 4788187, %v407
        %v409 = vand.u32 2147483647, %v408
        %v411 = vcvt.s32.f32 %v404
        %v412 = vmul.f32 %v411, %v409
        %v413 = vxor.u32 %v412, 2147483648
        %v414 = vsel %vm293, %v413, %v412
        %v415 = vsub.s32 4, %v391
        %v416 = vsel %vm293, %v415, %v391
        %v417 = vsel %vm292, %v283, %v414
        %v418 = vsel %vm292, 0, %v416
        %v419 = vmul.f32 %v417, %v417
        %v420 = vmul.f32 %v419, -0.001358992
        %v421 = vadd.f32 %v420, 0.041655596
        %v422 = vmul.f32 %v419, %v421
        %v423 = vadd.f32 %v422, -0.4999988
        %v424 = vmul.f32 %v419, %v423
        %v425 = vadd.f32 1.0, %v424
        %v426 = vmul.f32 %v417, %v417
        %v427 = vmul.f32 %v426, -0.00019511016
        %v428 = vadd.f32 %v427, 0.008332121
        %v429 = vmul.f32 %v426, %v428
        %v430 = vadd.f32 %v429, -0.16666654
        %v431 = vmul.f32 %v426, %v430
        %v432 = vadd.f32 %v431, 1.0
        %v433 = vmul.f32 %v432, %v417
        %vm434 = vweird.f32 %v283
        %v435 = vadd.s32 %v418, 3
        %v436 = vand.u32 %v435, 3
        %vm437 = vcmp.lt.s32.totalorder %v436, 2
        %vm438 = vcmp.eq.s32.totalorder %v436, 0
        %v439 = vxor.u32 %v433, 2147483648
        %v440 = vsel %vm438, %v425, %v439
        %vm441 = vcmp.eq.s32.totalorder %v436, 2
        %v442 = vxor.u32 %v425, 2147483648
        %v443 = vsel %vm441, %v442, %v433
        %v444 = vsel %vm437, %v440, %v443
        %v445 = vsel %vm434, nan, %v444
        %v446 = vand.u32 2147483647, %v284
        %vm447 = vcmp.le.f32.partialorder %v446, 0.7853982
        %vm448 = vcmp.lt.s32.totalorder %v284, 0
        %v449 = vand.u32 %v284, 2139095040
        %v450 = vshrl.u32 %v449, 23
        %v451 = vsub.s32 %v450, 127
        %v452 = vand.u32 2147483647, %v284
        %v453 = vand.u32 %v452, 8388607
        %v454 = vor.u32 %v453, 8388608
        %v455 = vsub.s32 0, %v454
        %v456 = vadd.s32 %v451, 1
        %vm457 = vcmp.gt.s32.totalorder %v456, 0
        %v458 = vsel %vm457, %v456, 0
        %v459 = vshrl.u32 %v458, 5
        %v460 = vand.u32 %v458, 31
        %v461 = vsub.s32 32, %v460
        %v462 = vshrl.u32 683565275, %v461
        %v463 = vshll.u32 683565275, %v460
        %v464 = vshrl.u32 2475754826, %v461
        %v465 = vor.u32 %v463, %v464
        %v466 = vshll.u32 2475754826, %v460
        %v467 = vshrl.u32 2131351028, %v461
        %v468 = vor.u32 %v466, %v467
        %v469 = vshll.u32 2131351028, %v460
        %v470 = vshrl.u32 2102212464, %v461
        %v471 = vor.u32 %v469, %v470
        %v472 = vshll.u32 2102212464, %v460
        %v473 = vshrl.u32 920167782, %v461
        %v474 = vor.u32 %v472, %v473
        %v475 = vshll.u32 920167782, %v460
        %v476 = vshrl.u32 1326507024, %v461
        %v477 = vor.u32 %v475, %v476
        %vm478 = vcmp.lt.s32.totalorder %v459, 1
        %vm479 = vcmp.lt.s32.totalorder %v459, 2
        %vm480 = vcmp.lt.s32.totalorder %v459, 3
        %vm481 = vcmp.lt.s32.totalorder %v459, 4
        %v482 = vsel %vm478, %v462, %v465
        %v483 = vsel %vm481, %v471, 2102212464
        %v484 = vsel %vm480, %v468, %v483
        %v485 = vsel %vm479, %v482, %v484
        %v486 = vsel %vm478, %v465, %v468
        %v487 = vsel %vm481, %v474, 920167782
        %v488 = vsel %vm480, %v471, %v487
        %v489 = vsel %vm479, %v486, %v488
        %v490 = vsel %vm478, %v468, %v471
        %v491 = vsel %vm481, %v477, 1326507024
        %v492 = vsel %vm480, %v474, %v491
        %v493 = vsel %vm479, %v490, %v492
        %v494 = vshll.u32 %v454, 8
        %v495 = vand.u32 %v494, 65535
        %v496 = vshrl.u32 %v494, 16
        %v497 = vand.u32 %v493, 65535
        %v498 = vshrl.u32 %v493, 16
        %v499 = vmul.u32 %v495, %v497
        %v500 = vmul.u32 %v495, %v498
        %v501 = vmul.u32 %v496, %v497
        %v502 = vmul.u32 %v496, %v498
        %v503 = vshll.u32 %v500, 16
        %v504 = vshrl.u32 %v500, 16
        %v505 = vshll.u32 %v501, 16
        %v506 = vshrl.u32 %v501, 16
        %vm507 = vc.u32 %v499, %v503
        %v508 = vsel %vm507, 1, 0
        %v509 = vadd.s32 %v499, %v503
        %v510 = vadd.s32 %v502, %v508
        %vm511 = vc.u32 %v509, %v505
        %v512 = vsel %vm511, 1, 0
        %v513 = vadd.s32 %v509, %v505
        %v514 = vadd.s32 %v510, %v512
        %v515 = vadd.s32 %v514, %v504
        %v516 = vadd.s32 %v515, %v506
        %v517 = vand.u32 %v494, 65535
        %v518 = vshrl.u32 %v494, 16
        %v519 = vand.u32 %v489, 65535
        %v520 = vshrl.u32 %v489, 16
        %v521 = vmul.u32 %v517, %v519
        %v522 = vmul.u32 %v517, %v520
        %v523 = vmul.u32 %v518, %v519
        %v524 = vmul.u32 %v518, %v520
        %v525 = vshll.u32 %v522, 16
        %v526 = vshrl.u32 %v522, 16
        %v527 = vshll.u32 %v523, 16
        %v528 = vshrl.u32 %v523, 16
        %vm529 = vc.u32 %v521, %v525
        %v530 = vsel %vm529, 1, 0
        %v531 = vadd.s32 %v521, %v525
        %v532 = vadd.s32 %v524, %v530
        %vm533 = vc.u32 %v531, %v527
        %v534 = vsel %vm533, 1, 0
        %v535 = vadd.s32 %v531, %v527
        %v536 = vadd.s32 %v532, %v534
        %v537 = vadd.s32 %v536, %v526
        %v538 = vadd.s32 %v537, %v528
        %v539 = vmul.u32 %v494, %v485
        %v540 = vadd.s32 %v516, %v535
        %vm541 = vc.u32 %v516, %v535
        %v542 = vadd.s32 %v538, 1
        %v543 = vsel %vm541, %v542, %v538
        %v544 = vadd.s32 %v539, %v543
        %v545 = vadd.s32 %v544, 536870912
        %v546 = vshrl.u32 %v545, 30
        %v547 = vshll.u32 %v546, 30
        %v548 = vsub.s32 %v544, %v547
        %vm549 = vcmp.lt.s32.totalorder %v548, 0
        %v550 = vsub.s32 0, %v548
        %v551 = vsel %vm549, %v550, %v548
        %v552 = vclz %v551
        %v553 = vsub.s32 %v552, 2
        %vm554 = vcmp.gt.s32.totalorder 0, %v553
        %v555 = vsel %vm554, 0, %v553
        %v556 = vsub.s32 32, %v555
        %v557 = vshll.u32 %v548, %v555
        %v558 = vshrl.u32 %v540, %v556
        %v559 = vor.u32 %v557, %v558
        %v560 = vsub.s32 4294967266, %v555
        %v561 = vadd.s32 %v560, 127
        %v562 = vshll.u32 %v561, 23
        %v563 = vor.u32 4788187, %v562
        %v564 = vand.u32 2147483647, %v563
        %v566 = vcvt.s32.f32 %v559
        %v567 = vmul.f32 %v566, %v564
        %v568 = vxor.u32 %v567, 2147483648
        %v569 = vsel %vm448, %v568, %v567
        %v570 = vsub.s32 4, %v546
        %v571 = vsel %vm448, %v570, %v546
        %v572 = vsel %vm447, %v284, %v569
        %v573 = vsel %vm447, 0, %v571
        %v574 = vmul.f32 %v572, %v572
        %v575 = vmul.f32 %v574, -0.001358992
        %v576 = vadd.f32 %v575, 0.041655596
        %v577 = vmul.f32 %v574, %v576
        %v578 = vadd.f32 %v577, -0.4999988
        %v579 = vmul.f32 %v574, %v578
        %v580 = vadd.f32 1.0, %v579
        %v581 = vmul.f32 %v572, %v572
        %v582 = vmul.f32 %v581, -0.00019511016
        %v583 = vadd.f32 %v582, 0.008332121
        %v584 = vmul.f32 %v581, %v583
        %v585 = vadd.f32 %v584, -0.16666654
        %v586 = vmul.f32 %v581, %v585
        %v587 = vadd.f32 %v586, 1.0
        %v588 = vmul.f32 %v587, %v572
        %vm589 = vweird.f32 %v284
        %v590 = vadd.s32 %v573, 3
        %v591 = vand.u32 %v590, 3
        %vm592 = vcmp.lt.s32.totalorder %v591, 2
        %vm593 = vcmp.eq.s32.totalorder %v591, 0
        %v594 = vxor.u32 %v588, 2147483648
        %v595 = vsel %vm593, %v580, %v594
        %vm596 = vcmp.eq.s32.totalorder %v591, 2
        %v597 = vxor.u32 %v580, 2147483648
        %v598 = vsel %vm596, %v597, %v588
        %v599 = vsel %vm592, %v595, %v598
        %v600 = vsel %vm589, nan, %v599
        %v601 = vand.u32 2147483647, %v285
        %vm602 = vcmp.le.f32.partialorder %v601, 0.7853982
        %vm603 = vcmp.lt.s32.totalorder %v285, 0
        %v604 = vand.u32 %v285, 2139095040
        %v605 = vshrl.u32 %v604, 23
        %v606 = vsub.s32 %v605, 127
        %v607 = vand.u32 2147483647, %v285
        %v608 = vand.u32 %v607, 8388607
        %v609 = vor.u32 %v608, 8388608
        %v610 = vsub.s32 0, %v609
        %v611 = vadd.s32 %v606, 1
        %vm612 = vcmp.gt.s32.totalorder %v611, 0
        %v613 = vsel %vm612, %v611, 0
        %v614 = vshrl.u32 %v613, 5
        %v615 = vand.u32 %v613, 31
        %v616 = vsub.s32 32, %v615
        %v617 = vshrl.u32 683565275, %v616
        %v618 = vshll.u32 683565275, %v615
        %v619 = vshrl.u32 2475754826, %v616
        %v620 = vor.u32 %v618, %v619
        %v621 = vshll.u32 2475754826, %v615
        %v622 = vshrl.u32 2131351028, %v616
        %v623 = vor.u32 %v621, %v622
        %v624 = vshll.u32 2131351028, %v615
        %v625 = vshrl.u32 2102212464, %v616
        %v626 = vor.u32 %v624, %v625
        %v627 = vshll.u32 2102212464, %v615
        %v628 = vshrl.u32 920167782, %v616
        %v629 = vor.u32 %v627, %v628
        %v630 = vshll.u32 920167782, %v615
        %v631 = vshrl.u32 1326507024, %v616
        %v632 = vor.u32 %v630, %v631
        %vm633 = vcmp.lt.s32.totalorder %v614, 1
        %vm634 = vcmp.lt.s32.totalorder %v614, 2
        %vm635 = vcmp.lt.s32.totalorder %v614, 3
        %vm636 = vcmp.lt.s32.totalorder %v614, 4
        %v637 = vsel %vm633, %v617, %v620
        %v638 = vsel %vm636, %v626, 2102212464
        %v639 = vsel %vm635, %v623, %v638
        %v640 = vsel %vm634, %v637, %v639
        %v641 = vsel %vm633, %v620, %v623
        %v642 = vsel %vm636, %v629, 920167782
        %v643 = vsel %vm635, %v626, %v642
        %v644 = vsel %vm634, %v641, %v643
        %v645 = vsel %vm633, %v623, %v626
        %v646 = vsel %vm636, %v632, 1326507024
        %v647 = vsel %vm635, %v629, %v646
        %v648 = vsel %vm634, %v645, %v647
        %v649 = vshll.u32 %v609, 8
        %v650 = vand.u32 %v649, 65535
        %v651 = vshrl.u32 %v649, 16
        %v652 = vand.u32 %v648, 65535
        %v653 = vshrl.u32 %v648, 16
        %v654 = vmul.u32 %v650, %v652
        %v655 = vmul.u32 %v650, %v653
        %v656 = vmul.u32 %v651, %v652
        %v657 = vmul.u32 %v651, %v653
        %v658 = vshll.u32 %v655, 16
        %v659 = vshrl.u32 %v655, 16
        %v660 = vshll.u32 %v656, 16
        %v661 = vshrl.u32 %v656, 16
        %vm662 = vc.u32 %v654, %v658
        %v663 = vsel %vm662, 1, 0
        %v664 = vadd.s32 %v654, %v658
        %v665 = vadd.s32 %v657, %v663
        %vm666 = vc.u32 %v664, %v660
        %v667 = vsel %vm666, 1, 0
        %v668 = vadd.s32 %v664, %v660
        %v669 = vadd.s32 %v665, %v667
        %v670 = vadd.s32 %v669, %v659
        %v671 = vadd.s32 %v670, %v661
        %v672 = vand.u32 %v649, 65535
        %v673 = vshrl.u32 %v649, 16
        %v674 = vand.u32 %v644, 65535
        %v675 = vshrl.u32 %v644, 16
        %v676 = vmul.u32 %v672, %v674
        %v677 = vmul.u32 %v672, %v675
        %v678 = vmul.u32 %v673, %v674
        %v679 = vmul.u32 %v673, %v675
        %v680 = vshll.u32 %v677, 16
        %v681 = vshrl.u32 %v677, 16
        %v682 = vshll.u32 %v678, 16
        %v683 = vshrl.u32 %v678, 16
        %vm684 = vc.u32 %v676, %v680
        %v685 = vsel %vm684, 1, 0
        %v686 = vadd.s32 %v676, %v680
        %v687 = vadd.s32 %v679, %v685
        %vm688 = vc.u32 %v686, %v682
        %v689 = vsel %vm688, 1, 0
        %v690 = vadd.s32 %v686, %v682
        %v691 = vadd.s32 %v687, %v689
        %v692 = vadd.s32 %v691, %v681
        %v693 = vadd.s32 %v692, %v683
        %v694 = vmul.u32 %v649, %v640
        %v695 = vadd.s32 %v671, %v690
        %vm696 = vc.u32 %v671, %v690
        %v697 = vadd.s32 %v693, 1
        %v698 = vsel %vm696, %v697, %v693
        %v699 = vadd.s32 %v694, %v698
        %v700 = vadd.s32 %v699, 536870912
        %v701 = vshrl.u32 %v700, 30
        %v702 = vshll.u32 %v701, 30
        %v703 = vsub.s32 %v699, %v702
        %vm704 = vcmp.lt.s32.totalorder %v703, 0
        %v705 = vsub.s32 0, %v703
        %v706 = vsel %vm704, %v705, %v703
        %v707 = vclz %v706
        %v708 = vsub.s32 %v707, 2
        %vm709 = vcmp.gt.s32.totalorder 0, %v708
        %v710 = vsel %vm709, 0, %v708
        %v711 = vsub.s32 32, %v710
        %v712 = vshll.u32 %v703, %v710
        %v713 = vshrl.u32 %v695, %v711
        %v714 = vor.u32 %v712, %v713
        %v715 = vsub.s32 4294967266, %v710
        %v716 = vadd.s32 %v715, 127
        %v717 = vshll.u32 %v716, 23
        %v718 = vor.u32 4788187, %v717
        %v719 = vand.u32 2147483647, %v718
        %v721 = vcvt.s32.f32 %v714
        %v722 = vmul.f32 %v721, %v719
        %v723 = vxor.u32 %v722, 2147483648
        %v724 = vsel %vm603, %v723, %v722
        %v725 = vsub.s32 4, %v701
        %v726 = vsel %vm603, %v725, %v701
        %v727 = vsel %vm602, %v285, %v724
        %v728 = vsel %vm602, 0, %v726
        %v729 = vmul.f32 %v727, %v727
        %v730 = vmul.f32 %v729, -0.001358992
        %v731 = vadd.f32 %v730, 0.041655596
        %v732 = vmul.f32 %v729, %v731
        %v733 = vadd.f32 %v732, -0.4999988
        %v734 = vmul.f32 %v729, %v733
        %v735 = vadd.f32 1.0, %v734
        %v736 = vmul.f32 %v727, %v727
        %v737 = vmul.f32 %v736, -0.00019511016
        %v738 = vadd.f32 %v737, 0.008332121
        %v739 = vmul.f32 %v736, %v738
        %v740 = vadd.f32 %v739, -0.16666654
        %v741 = vmul.f32 %v736, %v740
        %v742 = vadd.f32 %v741, 1.0
        %v743 = vmul.f32 %v742, %v727
        %vm744 = vweird.f32 %v285
        %v745 = vadd.s32 %v728, 3
        %v746 = vand.u32 %v745, 3
        %vm747 = vcmp.lt.s32.totalorder %v746, 2
        %vm748 = vcmp.eq.s32.totalorder %v746, 0
        %v749 = vxor.u32 %v743, 2147483648
        %v750 = vsel %vm748, %v735, %v749
        %vm751 = vcmp.eq.s32.totalorder %v746, 2
        %v752 = vxor.u32 %v735, 2147483648
        %v753 = vsel %vm751, %v752, %v743
        %v754 = vsel %vm747, %v750, %v753
        %v755 = vsel %vm744, nan, %v754
        %v756 = vand.u32 2147483647, %v286
        %vm757 = vcmp.le.f32.partialorder %v756, 0.7853982
        %vm758 = vcmp.lt.s32.totalorder %v286, 0
        %v759 = vand.u32 %v286, 2139095040
        %v760 = vshrl.u32 %v759, 23
        %v761 = vsub.s32 %v760, 127
        %v762 = vand.u32 2147483647, %v286
        %v763 = vand.u32 %v762, 8388607
        %v764 = vor.u32 %v763, 8388608
        %v765 = vsub.s32 0, %v764
        %v766 = vadd.s32 %v761, 1
        %vm767 = vcmp.gt.s32.totalorder %v766, 0
        %v768 = vsel %vm767, %v766, 0
        %v769 = vshrl.u32 %v768, 5
        %v770 = vand.u32 %v768, 31
        %v771 = vsub.s32 32, %v770
        %v772 = vshrl.u32 683565275, %v771
        %v773 = vshll.u32 683565275, %v770
        %v774 = vshrl.u32 2475754826, %v771
        %v775 = vor.u32 %v773, %v774
        %v776 = vshll.u32 2475754826, %v770
        %v777 = vshrl.u32 2131351028, %v771
        %v778 = vor.u32 %v776, %v777
        %v779 = vshll.u32 2131351028, %v770
        %v780 = vshrl.u32 2102212464, %v771
        %v781 = vor.u32 %v779, %v780
        %v782 = vshll.u32 2102212464, %v770
        %v783 = vshrl.u32 920167782, %v771
        %v784 = vor.u32 %v782, %v783
        %v785 = vshll.u32 920167782, %v770
        %v786 = vshrl.u32 1326507024, %v771
        %v787 = vor.u32 %v785, %v786
        %vm788 = vcmp.lt.s32.totalorder %v769, 1
        %vm789 = vcmp.lt.s32.totalorder %v769, 2
        %vm790 = vcmp.lt.s32.totalorder %v769, 3
        %vm791 = vcmp.lt.s32.totalorder %v769, 4
        %v792 = vsel %vm788, %v772, %v775
        %v793 = vsel %vm791, %v781, 2102212464
        %v794 = vsel %vm790, %v778, %v793
        %v795 = vsel %vm789, %v792, %v794
        %v796 = vsel %vm788, %v775, %v778
        %v797 = vsel %vm791, %v784, 920167782
        %v798 = vsel %vm790, %v781, %v797
        %v799 = vsel %vm789, %v796, %v798
        %v800 = vsel %vm788, %v778, %v781
        %v801 = vsel %vm791, %v787, 1326507024
        %v802 = vsel %vm790, %v784, %v801
        %v803 = vsel %vm789, %v800, %v802
        %v804 = vshll.u32 %v764, 8
        %v805 = vand.u32 %v804, 65535
        %v806 = vshrl.u32 %v804, 16
        %v807 = vand.u32 %v803, 65535
        %v808 = vshrl.u32 %v803, 16
        %v809 = vmul.u32 %v805, %v807
        %v810 = vmul.u32 %v805, %v808
        %v811 = vmul.u32 %v806, %v807
        %v812 = vmul.u32 %v806, %v808
        %v813 = vshll.u32 %v810, 16
        %v814 = vshrl.u32 %v810, 16
        %v815 = vshll.u32 %v811, 16
        %v816 = vshrl.u32 %v811, 16
        %vm817 = vc.u32 %v809, %v813
        %v818 = vsel %vm817, 1, 0
        %v819 = vadd.s32 %v809, %v813
        %v820 = vadd.s32 %v812, %v818
        %vm821 = vc.u32 %v819, %v815
        %v822 = vsel %vm821, 1, 0
        %v823 = vadd.s32 %v819, %v815
        %v824 = vadd.s32 %v820, %v822
        %v825 = vadd.s32 %v824, %v814
        %v826 = vadd.s32 %v825, %v816
        %v827 = vand.u32 %v804, 65535
        %v828 = vshrl.u32 %v804, 16
        %v829 = vand.u32 %v799, 65535
        %v830 = vshrl.u32 %v799, 16
        %v831 = vmul.u32 %v827, %v829
        %v832 = vmul.u32 %v827, %v830
        %v833 = vmul.u32 %v828, %v829
        %v834 = vmul.u32 %v828, %v830
        %v835 = vshll.u32 %v832, 16
        %v836 = vshrl.u32 %v832, 16
        %v837 = vshll.u32 %v833, 16
        %v838 = vshrl.u32 %v833, 16
        %vm839 = vc.u32 %v831, %v835
        %v840 = vsel %vm839, 1, 0
        %v841 = vadd.s32 %v831, %v835
        %v842 = vadd.s32 %v834, %v840
        %vm843 = vc.u32 %v841, %v837
        %v844 = vsel %vm843, 1, 0
        %v845 = vadd.s32 %v841, %v837
        %v846 = vadd.s32 %v842, %v844
        %v847 = vadd.s32 %v846, %v836
        %v848 = vadd.s32 %v847, %v838
        %v849 = vmul.u32 %v804, %v795
        %v850 = vadd.s32 %v826, %v845
        %vm851 = vc.u32 %v826, %v845
        %v852 = vadd.s32 %v848, 1
        %v853 = vsel %vm851, %v852, %v848
        %v854 = vadd.s32 %v849, %v853
        %v855 = vadd.s32 %v854, 536870912
        %v856 = vshrl.u32 %v855, 30
        %v857 = vshll.u32 %v856, 30
        %v858 = vsub.s32 %v854, %v857
        %vm859 = vcmp.lt.s32.totalorder %v858, 0
        %v860 = vsub.s32 0, %v858
        %v861 = vsel %vm859, %v860, %v858
        %v862 = vclz %v861
        %v863 = vsub.s32 %v862, 2
        %vm864 = vcmp.gt.s32.totalorder 0, %v863
        %v865 = vsel %vm864, 0, %v863
        %v866 = vsub.s32 32, %v865
        %v867 = vshll.u32 %v858, %v865
        %v868 = vshrl.u32 %v850, %v866
        %v869 = vor.u32 %v867, %v868
        %v870 = vsub.s32 4294967266, %v865
        %v871 = vadd.s32 %v870, 127
        %v872 = vshll.u32 %v871, 23
        %v873 = vor.u32 4788187, %v872
        %v874 = vand.u32 2147483647, %v873
        %v876 = vcvt.s32.f32 %v869
        %v877 = vmul.f32 %v876, %v874
        %v878 = vxor.u32 %v877, 2147483648
        %v879 = vsel %vm758, %v878, %v877
        %v880 = vsub.s32 4, %v856
        %v881 = vsel %vm758, %v880, %v856
        %v882 = vsel %vm757, %v286, %v879
        %v883 = vsel %vm757, 0, %v881
        %v884 = vmul.f32 %v882, %v882
        %v885 = vmul.f32 %v884, -0.001358992
        %v886 = vadd.f32 %v885, 0.041655596
        %v887 = vmul.f32 %v884, %v886
        %v888 = vadd.f32 %v887, -0.4999988
        %v889 = vmul.f32 %v884, %v888
        %v890 = vadd.f32 1.0, %v889
        %v891 = vmul.f32 %v882, %v882
        %v892 = vmul.f32 %v891, -0.00019511016
        %v893 = vadd.f32 %v892, 0.008332121
        %v894 = vmul.f32 %v891, %v893
        %v895 = vadd.f32 %v894, -0.16666654
        %v896 = vmul.f32 %v891, %v895
        %v897 = vadd.f32 %v896, 1.0
        %v898 = vmul.f32 %v897, %v882
        %vm899 = vweird.f32 %v286
        %v900 = vadd.s32 %v883, 3
        %v901 = vand.u32 %v900, 3
        %vm902 = vcmp.lt.s32.totalorder %v901, 2
        %vm903 = vcmp.eq.s32.totalorder %v901, 0
        %v904 = vxor.u32 %v898, 2147483648
        %v905 = vsel %vm903, %v890, %v904
        %vm906 = vcmp.eq.s32.totalorder %v901, 2
        %v907 = vxor.u32 %v890, 2147483648
        %v908 = vsel %vm906, %v907, %v898
        %v909 = vsel %vm902, %v905, %v908
        %v910 = vsel %vm899, nan, %v909
        %v911 = vand.u32 2147483647, %v287
        %vm912 = vcmp.le.f32.partialorder %v911, 0.7853982
        %vm913 = vcmp.lt.s32.totalorder %v287, 0
        %v914 = vand.u32 %v287, 2139095040
        %v915 = vshrl.u32 %v914, 23
        %v916 = vsub.s32 %v915, 127
        %v917 = vand.u32 2147483647, %v287
        %v918 = vand.u32 %v917, 8388607
        %v919 = vor.u32 %v918, 8388608
        %v920 = vsub.s32 0, %v919
        %v921 = vadd.s32 %v916, 1
        %vm922 = vcmp.gt.s32.totalorder %v921, 0
        %v923 = vsel %vm922, %v921, 0
        %v924 = vshrl.u32 %v923, 5
        %v925 = vand.u32 %v923, 31
        %v926 = vsub.s32 32, %v925
        %v927 = vshrl.u32 683565275, %v926
        %v928 = vshll.u32 683565275, %v925
        %v929 = vshrl.u32 2475754826, %v926
        %v930 = vor.u32 %v928, %v929
        %v931 = vshll.u32 2475754826, %v925
        %v932 = vshrl.u32 2131351028, %v926
        %v933 = vor.u32 %v931, %v932
        %v934 = vshll.u32 2131351028, %v925
        %v935 = vshrl.u32 2102212464, %v926
        %v936 = vor.u32 %v934, %v935
        %v937 = vshll.u32 2102212464, %v925
        %v938 = vshrl.u32 920167782, %v926
        %v939 = vor.u32 %v937, %v938
        %v940 = vshll.u32 920167782, %v925
        %v941 = vshrl.u32 1326507024, %v926
        %v942 = vor.u32 %v940, %v941
        %vm943 = vcmp.lt.s32.totalorder %v924, 1
        %vm944 = vcmp.lt.s32.totalorder %v924, 2
        %vm945 = vcmp.lt.s32.totalorder %v924, 3
        %vm946 = vcmp.lt.s32.totalorder %v924, 4
        %v947 = vsel %vm943, %v927, %v930
        %v948 = vsel %vm946, %v936, 2102212464
        %v949 = vsel %vm945, %v933, %v948
        %v950 = vsel %vm944, %v947, %v949
        %v951 = vsel %vm943, %v930, %v933
        %v952 = vsel %vm946, %v939, 920167782
        %v953 = vsel %vm945, %v936, %v952
        %v954 = vsel %vm944, %v951, %v953
        %v955 = vsel %vm943, %v933, %v936
        %v956 = vsel %vm946, %v942, 1326507024
        %v957 = vsel %vm945, %v939, %v956
        %v958 = vsel %vm944, %v955, %v957
        %v959 = vshll.u32 %v919, 8
        %v960 = vand.u32 %v959, 65535
        %v961 = vshrl.u32 %v959, 16
        %v962 = vand.u32 %v958, 65535
        %v963 = vshrl.u32 %v958, 16
        %v964 = vmul.u32 %v960, %v962
        %v965 = vmul.u32 %v960, %v963
        %v966 = vmul.u32 %v961, %v962
        %v967 = vmul.u32 %v961, %v963
        %v968 = vshll.u32 %v965, 16
        %v969 = vshrl.u32 %v965, 16
        %v970 = vshll.u32 %v966, 16
        %v971 = vshrl.u32 %v966, 16
        %vm972 = vc.u32 %v964, %v968
        %v973 = vsel %vm972, 1, 0
        %v974 = vadd.s32 %v964, %v968
        %v975 = vadd.s32 %v967, %v973
        %vm976 = vc.u32 %v974, %v970
        %v977 = vsel %vm976, 1, 0
        %v978 = vadd.s32 %v974, %v970
        %v979 = vadd.s32 %v975, %v977
        %v980 = vadd.s32 %v979, %v969
        %v981 = vadd.s32 %v980, %v971
        %v982 = vand.u32 %v959, 65535
        %v983 = vshrl.u32 %v959, 16
        %v984 = vand.u32 %v954, 65535
        %v985 = vshrl.u32 %v954, 16
        %v986 = vmul.u32 %v982, %v984
        %v987 = vmul.u32 %v982, %v985
        %v988 = vmul.u32 %v983, %v984
        %v989 = vmul.u32 %v983, %v985
        %v990 = vshll.u32 %v987, 16
        %v991 = vshrl.u32 %v987, 16
        %v992 = vshll.u32 %v988, 16
        %v993 = vshrl.u32 %v988, 16
        %vm994 = vc.u32 %v986, %v990
        %v995 = vsel %vm994, 1, 0
        %v996 = vadd.s32 %v986, %v990
        %v997 = vadd.s32 %v989, %v995
        %vm998 = vc.u32 %v996, %v992
        %v999 = vsel %vm998, 1, 0
        %v1000 = vadd.s32 %v996, %v992
        %v1001 = vadd.s32 %v997, %v999
        %v1002 = vadd.s32 %v1001, %v991
        %v1003 = vadd.s32 %v1002, %v993
        %v1004 = vmul.u32 %v959, %v950
        %v1005 = vadd.s32 %v981, %v1000
        %vm1006 = vc.u32 %v981, %v1000
        %v1007 = vadd.s32 %v1003, 1
        %v1008 = vsel %vm1006, %v1007, %v1003
        %v1009 = vadd.s32 %v1004, %v1008
        %v1010 = vadd.s32 %v1009, 536870912
        %v1011 = vshrl.u32 %v1010, 30
        %v1012 = vshll.u32 %v1011, 30
        %v1013 = vsub.s32 %v1009, %v1012
        %vm1014 = vcmp.lt.s32.totalorder %v1013, 0
        %v1015 = vsub.s32 0, %v1013
        %v1016 = vsel %vm1014, %v1015, %v1013
        %v1017 = vclz %v1016
        %v1018 = vsub.s32 %v1017, 2
        %vm1019 = vcmp.gt.s32.totalorder 0, %v1018
        %v1020 = vsel %vm1019, 0, %v1018
        %v1021 = vsub.s32 32, %v1020
        %v1022 = vshll.u32 %v1013, %v1020
        %v1023 = vshrl.u32 %v1005, %v1021
        %v1024 = vor.u32 %v1022, %v1023
        %v1025 = vsub.s32 4294967266, %v1020
        %v1026 = vadd.s32 %v1025, 127
        %v1027 = vshll.u32 %v1026, 23
        %v1028 = vor.u32 4788187, %v1027
        %v1029 = vand.u32 2147483647, %v1028
        %v1031 = vcvt.s32.f32 %v1024
        %v1032 = vmul.f32 %v1031, %v1029
        %v1033 = vxor.u32 %v1032, 2147483648
        %v1034 = vsel %vm913, %v1033, %v1032
        %v1035 = vsub.s32 4, %v1011
        %v1036 = vsel %vm913, %v1035, %v1011
        %v1037 = vsel %vm912, %v287, %v1034
        %v1038 = vsel %vm912, 0, %v1036
        %v1039 = vmul.f32 %v1037, %v1037
        %v1040 = vmul.f32 %v1039, -0.001358992
        %v1041 = vadd.f32 %v1040, 0.041655596
        %v1042 = vmul.f32 %v1039, %v1041
        %v1043 = vadd.f32 %v1042, -0.4999988
        %v1044 = vmul.f32 %v1039, %v1043
        %v1045 = vadd.f32 1.0, %v1044
        %v1046 = vmul.f32 %v1037, %v1037
        %v1047 = vmul.f32 %v1046, -0.00019511016
        %v1048 = vadd.f32 %v1047, 0.008332121
        %v1049 = vmul.f32 %v1046, %v1048
        %v1050 = vadd.f32 %v1049, -0.16666654
        %v1051 = vmul.f32 %v1046, %v1050
        %v1052 = vadd.f32 %v1051, 1.0
        %v1053 = vmul.f32 %v1052, %v1037
        %vm1054 = vweird.f32 %v287
        %v1055 = vadd.s32 %v1038, 3
        %v1056 = vand.u32 %v1055, 3
        %vm1057 = vcmp.lt.s32.totalorder %v1056, 2
        %vm1058 = vcmp.eq.s32.totalorder %v1056, 0
        %v1059 = vxor.u32 %v1053, 2147483648
        %v1060 = vsel %vm1058, %v1045, %v1059
        %vm1061 = vcmp.eq.s32.totalorder %v1056, 2
        %v1062 = vxor.u32 %v1045, 2147483648
        %v1063 = vsel %vm1061, %v1062, %v1053
        %v1064 = vsel %vm1057, %v1060, %v1063
        %v1065 = vsel %vm1054, nan, %v1064
        %v1066 = vand.u32 2147483647, %v288
        %vm1067 = vcmp.le.f32.partialorder %v1066, 0.7853982
        %vm1068 = vcmp.lt.s32.totalorder %v288, 0
        %v1069 = vand.u32 %v288, 2139095040
        %v1070 = vshrl.u32 %v1069, 23
        %v1071 = vsub.s32 %v1070, 127
        %v1072 = vand.u32 2147483647, %v288
        %v1073 = vand.u32 %v1072, 8388607
        %v1074 = vor.u32 %v1073, 8388608
        %v1075 = vsub.s32 0, %v1074
        %v1076 = vadd.s32 %v1071, 1
        %vm1077 = vcmp.gt.s32.totalorder %v1076, 0
        %v1078 = vsel %vm1077, %v1076, 0
        %v1079 = vshrl.u32 %v1078, 5
        %v1080 = vand.u32 %v1078, 31
        %v1081 = vsub.s32 32, %v1080
        %v1082 = vshrl.u32 683565275, %v1081
        %v1083 = vshll.u32 683565275, %v1080
        %v1084 = vshrl.u32 2475754826, %v1081
        %v1085 = vor.u32 %v1083, %v1084
        %v1086 = vshll.u32 2475754826, %v1080
        %v1087 = vshrl.u32 2131351028, %v1081
        %v1088 = vor.u32 %v1086, %v1087
        %v1089 = vshll.u32 2131351028, %v1080
        %v1090 = vshrl.u32 2102212464, %v1081
        %v1091 = vor.u32 %v1089, %v1090
        %v1092 = vshll.u32 2102212464, %v1080
        %v1093 = vshrl.u32 920167782, %v1081
        %v1094 = vor.u32 %v1092, %v1093
        %v1095 = vshll.u32 920167782, %v1080
        %v1096 = vshrl.u32 1326507024, %v1081
        %v1097 = vor.u32 %v1095, %v1096
        %vm1098 = vcmp.lt.s32.totalorder %v1079, 1
        %vm1099 = vcmp.lt.s32.totalorder %v1079, 2
        %vm1100 = vcmp.lt.s32.totalorder %v1079, 3
        %vm1101 = vcmp.lt.s32.totalorder %v1079, 4
        %v1102 = vsel %vm1098, %v1082, %v1085
        %v1103 = vsel %vm1101, %v1091, 2102212464
        %v1104 = vsel %vm1100, %v1088, %v1103
        %v1105 = vsel %vm1099, %v1102, %v1104
        %v1106 = vsel %vm1098, %v1085, %v1088
        %v1107 = vsel %vm1101, %v1094, 920167782
        %v1108 = vsel %vm1100, %v1091, %v1107
        %v1109 = vsel %vm1099, %v1106, %v1108
        %v1110 = vsel %vm1098, %v1088, %v1091
        %v1111 = vsel %vm1101, %v1097, 1326507024
        %v1112 = vsel %vm1100, %v1094, %v1111
        %v1113 = vsel %vm1099, %v1110, %v1112
        %v1114 = vshll.u32 %v1074, 8
        %v1115 = vand.u32 %v1114, 65535
        %v1116 = vshrl.u32 %v1114, 16
        %v1117 = vand.u32 %v1113, 65535
        %v1118 = vshrl.u32 %v1113, 16
        %v1119 = vmul.u32 %v1115, %v1117
        %v1120 = vmul.u32 %v1115, %v1118
        %v1121 = vmul.u32 %v1116, %v1117
        %v1122 = vmul.u32 %v1116, %v1118
        %v1123 = vshll.u32 %v1120, 16
        %v1124 = vshrl.u32 %v1120, 16
        %v1125 = vshll.u32 %v1121, 16
        %v1126 = vshrl.u32 %v1121, 16
        %vm1127 = vc.u32 %v1119, %v1123
        %v1128 = vsel %vm1127, 1, 0
        %v1129 = vadd.s32 %v1119, %v1123
        %v1130 = vadd.s32 %v1122, %v1128
        %vm1131 = vc.u32 %v1129, %v1125
        %v1132 = vsel %vm1131, 1, 0
        %v1133 = vadd.s32 %v1129, %v1125
        %v1134 = vadd.s32 %v1130, %v1132
        %v1135 = vadd.s32 %v1134, %v1124
        %v1136 = vadd.s32 %v1135, %v1126
        %v1137 = vand.u32 %v1114, 65535
        %v1138 = vshrl.u32 %v1114, 16
        %v1139 = vand.u32 %v1109, 65535
        %v1140 = vshrl.u32 %v1109, 16
        %v1141 = vmul.u32 %v1137, %v1139
        %v1142 = vmul.u32 %v1137, %v1140
        %v1143 = vmul.u32 %v1138, %v1139
        %v1144 = vmul.u32 %v1138, %v1140
        %v1145 = vshll.u32 %v1142, 16
        %v1146 = vshrl.u32 %v1142, 16
        %v1147 = vshll.u32 %v1143, 16
        %v1148 = vshrl.u32 %v1143, 16
        %vm1149 = vc.u32 %v1141, %v1145
        %v1150 = vsel %vm1149, 1, 0
        %v1151 = vadd.s32 %v1141, %v1145
        %v1152 = vadd.s32 %v1144, %v1150
        %vm1153 = vc.u32 %v1151, %v1147
        %v1154 = vsel %vm1153, 1, 0
        %v1155 = vadd.s32 %v1151, %v1147
        %v1156 = vadd.s32 %v1152, %v1154
        %v1157 = vadd.s32 %v1156, %v1146
        %v1158 = vadd.s32 %v1157, %v1148
        %v1159 = vmul.u32 %v1114, %v1105
        %v1160 = vadd.s32 %v1136, %v1155
        %vm1161 = vc.u32 %v1136, %v1155
        %v1162 = vadd.s32 %v1158, 1
        %v1163 = vsel %vm1161, %v1162, %v1158
        %v1164 = vadd.s32 %v1159, %v1163
        %v1165 = vadd.s32 %v1164, 536870912
        %v1166 = vshrl.u32 %v1165, 30
        %v1167 = vshll.u32 %v1166, 30
        %v1168 = vsub.s32 %v1164, %v1167
        %vm1169 = vcmp.lt.s32.totalorder %v1168, 0
        %v1170 = vsub.s32 0, %v1168
        %v1171 = vsel %vm1169, %v1170, %v1168
        %v1172 = vclz %v1171
        %v1173 = vsub.s32 %v1172, 2
        %vm1174 = vcmp.gt.s32.totalorder 0, %v1173
        %v1175 = vsel %vm1174, 0, %v1173
        %v1176 = vsub.s32 32, %v1175
        %v1177 = vshll.u32 %v1168, %v1175
        %v1178 = vshrl.u32 %v1160, %v1176
        %v1179 = vor.u32 %v1177, %v1178
        %v1180 = vsub.s32 4294967266, %v1175
        %v1181 = vadd.s32 %v1180, 127
        %v1182 = vshll.u32 %v1181, 23
        %v1183 = vor.u32 4788187, %v1182
        %v1184 = vand.u32 2147483647, %v1183
        %v1186 = vcvt.s32.f32 %v1179
        %v1187 = vmul.f32 %v1186, %v1184
        %v1188 = vxor.u32 %v1187, 2147483648
        %v1189 = vsel %vm1068, %v1188, %v1187
        %v1190 = vsub.s32 4, %v1166
        %v1191 = vsel %vm1068, %v1190, %v1166
        %v1192 = vsel %vm1067, %v288, %v1189
        %v1193 = vsel %vm1067, 0, %v1191
        %v1194 = vmul.f32 %v1192, %v1192
        %v1195 = vmul.f32 %v1194, -0.001358992
        %v1196 = vadd.f32 %v1195, 0.041655596
        %v1197 = vmul.f32 %v1194, %v1196
        %v1198 = vadd.f32 %v1197, -0.4999988
        %v1199 = vmul.f32 %v1194, %v1198
        %v1200 = vadd.f32 1.0, %v1199
        %v1201 = vmul.f32 %v1192, %v1192
        %v1202 = vmul.f32 %v1201, -0.00019511016
        %v1203 = vadd.f32 %v1202, 0.008332121
        %v1204 = vmul.f32 %v1201, %v1203
        %v1205 = vadd.f32 %v1204, -0.16666654
        %v1206 = vmul.f32 %v1201, %v1205
        %v1207 = vadd.f32 %v1206, 1.0
        %v1208 = vmul.f32 %v1207, %v1192
        %vm1209 = vweird.f32 %v288
        %v1210 = vadd.s32 %v1193, 3
        %v1211 = vand.u32 %v1210, 3
        %vm1212 = vcmp.lt.s32.totalorder %v1211, 2
        %vm1213 = vcmp.eq.s32.totalorder %v1211, 0
        %v1214 = vxor.u32 %v1208, 2147483648
        %v1215 = vsel %vm1213, %v1200, %v1214
        %vm1216 = vcmp.eq.s32.totalorder %v1211, 2
        %v1217 = vxor.u32 %v1200, 2147483648
        %v1218 = vsel %vm1216, %v1217, %v1208
        %v1219 = vsel %vm1212, %v1215, %v1218
        %v1220 = vsel %vm1209, nan, %v1219
        %v1221 = vand.u32 2147483647, %v289
        %vm1222 = vcmp.le.f32.partialorder %v1221, 0.7853982
        %vm1223 = vcmp.lt.s32.totalorder %v289, 0
        %v1224 = vand.u32 %v289, 2139095040
        %v1225 = vshrl.u32 %v1224, 23
        %v1226 = vsub.s32 %v1225, 127
        %v1227 = vand.u32 2147483647, %v289
        %v1228 = vand.u32 %v1227, 8388607
        %v1229 = vor.u32 %v1228, 8388608
        %v1230 = vsub.s32 0, %v1229
        %v1231 = vadd.s32 %v1226, 1
        %vm1232 = vcmp.gt.s32.totalorder %v1231, 0
        %v1233 = vsel %vm1232, %v1231, 0
        %v1234 = vshrl.u32 %v1233, 5
        %v1235 = vand.u32 %v1233, 31
        %v1236 = vsub.s32 32, %v1235
        %v1237 = vshrl.u32 683565275, %v1236
        %v1238 = vshll.u32 683565275, %v1235
        %v1239 = vshrl.u32 2475754826, %v1236
        %v1240 = vor.u32 %v1238, %v1239
        %v1241 = vshll.u32 2475754826, %v1235
        %v1242 = vshrl.u32 2131351028, %v1236
        %v1243 = vor.u32 %v1241, %v1242
        %v1244 = vshll.u32 2131351028, %v1235
        %v1245 = vshrl.u32 2102212464, %v1236
        %v1246 = vor.u32 %v1244, %v1245
        %v1247 = vshll.u32 2102212464, %v1235
        %v1248 = vshrl.u32 920167782, %v1236
        %v1249 = vor.u32 %v1247, %v1248
        %v1250 = vshll.u32 920167782, %v1235
        %v1251 = vshrl.u32 1326507024, %v1236
        %v1252 = vor.u32 %v1250, %v1251
        %vm1253 = vcmp.lt.s32.totalorder %v1234, 1
        %vm1254 = vcmp.lt.s32.totalorder %v1234, 2
        %vm1255 = vcmp.lt.s32.totalorder %v1234, 3
        %vm1256 = vcmp.lt.s32.totalorder %v1234, 4
        %v1257 = vsel %vm1253, %v1237, %v1240
        %v1258 = vsel %vm1256, %v1246, 2102212464
        %v1259 = vsel %vm1255, %v1243, %v1258
        %v1260 = vsel %vm1254, %v1257, %v1259
        %v1261 = vsel %vm1253, %v1240, %v1243
        %v1262 = vsel %vm1256, %v1249, 920167782
        %v1263 = vsel %vm1255, %v1246, %v1262
        %v1264 = vsel %vm1254, %v1261, %v1263
        %v1265 = vsel %vm1253, %v1243, %v1246
        %v1266 = vsel %vm1256, %v1252, 1326507024
        %v1267 = vsel %vm1255, %v1249, %v1266
        %v1268 = vsel %vm1254, %v1265, %v1267
        %v1269 = vshll.u32 %v1229, 8
        %v1270 = vand.u32 %v1269, 65535
        %v1271 = vshrl.u32 %v1269, 16
        %v1272 = vand.u32 %v1268, 65535
        %v1273 = vshrl.u32 %v1268, 16
        %v1274 = vmul.u32 %v1270, %v1272
        %v1275 = vmul.u32 %v1270, %v1273
        %v1276 = vmul.u32 %v1271, %v1272
        %v1277 = vmul.u32 %v1271, %v1273
        %v1278 = vshll.u32 %v1275, 16
        %v1279 = vshrl.u32 %v1275, 16
        %v1280 = vshll.u32 %v1276, 16
        %v1281 = vshrl.u32 %v1276, 16
        %vm1282 = vc.u32 %v1274, %v1278
        %v1283 = vsel %vm1282, 1, 0
        %v1284 = vadd.s32 %v1274, %v1278
        %v1285 = vadd.s32 %v1277, %v1283
        %vm1286 = vc.u32 %v1284, %v1280
        %v1287 = vsel %vm1286, 1, 0
        %v1288 = vadd.s32 %v1284, %v1280
        %v1289 = vadd.s32 %v1285, %v1287
        %v1290 = vadd.s32 %v1289, %v1279
        %v1291 = vadd.s32 %v1290, %v1281
        %v1292 = vand.u32 %v1269, 65535
        %v1293 = vshrl.u32 %v1269, 16
        %v1294 = vand.u32 %v1264, 65535
        %v1295 = vshrl.u32 %v1264, 16
        %v1296 = vmul.u32 %v1292, %v1294
        %v1297 = vmul.u32 %v1292, %v1295
        %v1298 = vmul.u32 %v1293, %v1294
        %v1299 = vmul.u32 %v1293, %v1295
        %v1300 = vshll.u32 %v1297, 16
        %v1301 = vshrl.u32 %v1297, 16
        %v1302 = vshll.u32 %v1298, 16
        %v1303 = vshrl.u32 %v1298, 16
        %vm1304 = vc.u32 %v1296, %v1300
        %v1305 = vsel %vm1304, 1, 0
        %v1306 = vadd.s32 %v1296, %v1300
        %v1307 = vadd.s32 %v1299, %v1305
        %vm1308 = vc.u32 %v1306, %v1302
        %v1309 = vsel %vm1308, 1, 0
        %v1310 = vadd.s32 %v1306, %v1302
        %v1311 = vadd.s32 %v1307, %v1309
        %v1312 = vadd.s32 %v1311, %v1301
        %v1313 = vadd.s32 %v1312, %v1303
        %v1314 = vmul.u32 %v1269, %v1260
        %v1315 = vadd.s32 %v1291, %v1310
        %vm1316 = vc.u32 %v1291, %v1310
        %v1317 = vadd.s32 %v1313, 1
        %v1318 = vsel %vm1316, %v1317, %v1313
        %v1319 = vadd.s32 %v1314, %v1318
        %v1320 = vadd.s32 %v1319, 536870912
        %v1321 = vshrl.u32 %v1320, 30
        %v1322 = vshll.u32 %v1321, 30
        %v1323 = vsub.s32 %v1319, %v1322
        %vm1324 = vcmp.lt.s32.totalorder %v1323, 0
        %v1325 = vsub.s32 0, %v1323
        %v1326 = vsel %vm1324, %v1325, %v1323
        %v1327 = vclz %v1326
        %v1328 = vsub.s32 %v1327, 2
        %vm1329 = vcmp.gt.s32.totalorder 0, %v1328
        %v1330 = vsel %vm1329, 0, %v1328
        %v1331 = vsub.s32 32, %v1330
        %v1332 = vshll.u32 %v1323, %v1330
        %v1333 = vshrl.u32 %v1315, %v1331
        %v1334 = vor.u32 %v1332, %v1333
        %v1335 = vsub.s32 4294967266, %v1330
        %v1336 = vadd.s32 %v1335, 127
        %v1337 = vshll.u32 %v1336, 23
        %v1338 = vor.u32 4788187, %v1337
        %v1339 = vand.u32 2147483647, %v1338
        %v1341 = vcvt.s32.f32 %v1334
        %v1342 = vmul.f32 %v1341, %v1339
        %v1343 = vxor.u32 %v1342, 2147483648
        %v1344 = vsel %vm1223, %v1343, %v1342
        %v1345 = vsub.s32 4, %v1321
        %v1346 = vsel %vm1223, %v1345, %v1321
        %v1347 = vsel %vm1222, %v289, %v1344
        %v1348 = vsel %vm1222, 0, %v1346
        %v1349 = vmul.f32 %v1347, %v1347
        %v1350 = vmul.f32 %v1349, -0.001358992
        %v1351 = vadd.f32 %v1350, 0.041655596
        %v1352 = vmul.f32 %v1349, %v1351
        %v1353 = vadd.f32 %v1352, -0.4999988
        %v1354 = vmul.f32 %v1349, %v1353
        %v1355 = vadd.f32 1.0, %v1354
        %v1356 = vmul.f32 %v1347, %v1347
        %v1357 = vmul.f32 %v1356, -0.00019511016
        %v1358 = vadd.f32 %v1357, 0.008332121
        %v1359 = vmul.f32 %v1356, %v1358
        %v1360 = vadd.f32 %v1359, -0.16666654
        %v1361 = vmul.f32 %v1356, %v1360
        %v1362 = vadd.f32 %v1361, 1.0
        %v1363 = vmul.f32 %v1362, %v1347
        %vm1364 = vweird.f32 %v289
        %v1365 = vadd.s32 %v1348, 3
        %v1366 = vand.u32 %v1365, 3
        %vm1367 = vcmp.lt.s32.totalorder %v1366, 2
        %vm1368 = vcmp.eq.s32.totalorder %v1366, 0
        %v1369 = vxor.u32 %v1363, 2147483648
        %v1370 = vsel %vm1368, %v1355, %v1369
        %vm1371 = vcmp.eq.s32.totalorder %v1366, 2
        %v1372 = vxor.u32 %v1355, 2147483648
        %v1373 = vsel %vm1371, %v1372, %v1363
        %v1374 = vsel %vm1367, %v1370, %v1373
        %v1375 = vsel %vm1364, nan, %v1374
        %v1376 = vand.u32 2147483647, %v290
        %vm1377 = vcmp.le.f32.partialorder %v1376, 0.7853982
        %vm1378 = vcmp.lt.s32.totalorder %v290, 0
        %v1379 = vand.u32 %v290, 2139095040
        %v1380 = vshrl.u32 %v1379, 23
        %v1381 = vsub.s32 %v1380, 127
        %v1382 = vand.u32 2147483647, %v290
        %v1383 = vand.u32 %v1382, 8388607
        %v1384 = vor.u32 %v1383, 8388608
        %v1385 = vsub.s32 0, %v1384
        %v1386 = vadd.s32 %v1381, 1
        %vm1387 = vcmp.gt.s32.totalorder %v1386, 0
        %v1388 = vsel %vm1387, %v1386, 0
        %v1389 = vshrl.u32 %v1388, 5
        %v1390 = vand.u32 %v1388, 31
        %v1391 = vsub.s32 32, %v1390
        %v1392 = vshrl.u32 683565275, %v1391
        %v1393 = vshll.u32 683565275, %v1390
        %v1394 = vshrl.u32 2475754826, %v1391
        %v1395 = vor.u32 %v1393, %v1394
        %v1396 = vshll.u32 2475754826, %v1390
        %v1397 = vshrl.u32 2131351028, %v1391
        %v1398 = vor.u32 %v1396, %v1397
        %v1399 = vshll.u32 2131351028, %v1390
        %v1400 = vshrl.u32 2102212464, %v1391
        %v1401 = vor.u32 %v1399, %v1400
        %v1402 = vshll.u32 2102212464, %v1390
        %v1403 = vshrl.u32 920167782, %v1391
        %v1404 = vor.u32 %v1402, %v1403
        %v1405 = vshll.u32 920167782, %v1390
        %v1406 = vshrl.u32 1326507024, %v1391
        %v1407 = vor.u32 %v1405, %v1406
        %vm1408 = vcmp.lt.s32.totalorder %v1389, 1
        %vm1409 = vcmp.lt.s32.totalorder %v1389, 2
        %vm1410 = vcmp.lt.s32.totalorder %v1389, 3
        %vm1411 = vcmp.lt.s32.totalorder %v1389, 4
        %v1412 = vsel %vm1408, %v1392, %v1395
        %v1413 = vsel %vm1411, %v1401, 2102212464
        %v1414 = vsel %vm1410, %v1398, %v1413
        %v1415 = vsel %vm1409, %v1412, %v1414
        %v1416 = vsel %vm1408, %v1395, %v1398
        %v1417 = vsel %vm1411, %v1404, 920167782
        %v1418 = vsel %vm1410, %v1401, %v1417
        %v1419 = vsel %vm1409, %v1416, %v1418
        %v1420 = vsel %vm1408, %v1398, %v1401
        %v1421 = vsel %vm1411, %v1407, 1326507024
        %v1422 = vsel %vm1410, %v1404, %v1421
        %v1423 = vsel %vm1409, %v1420, %v1422
        %v1424 = vshll.u32 %v1384, 8
        %v1425 = vand.u32 %v1424, 65535
        %v1426 = vshrl.u32 %v1424, 16
        %v1427 = vand.u32 %v1423, 65535
        %v1428 = vshrl.u32 %v1423, 16
        %v1429 = vmul.u32 %v1425, %v1427
        %v1430 = vmul.u32 %v1425, %v1428
        %v1431 = vmul.u32 %v1426, %v1427
        %v1432 = vmul.u32 %v1426, %v1428
        %v1433 = vshll.u32 %v1430, 16
        %v1434 = vshrl.u32 %v1430, 16
        %v1435 = vshll.u32 %v1431, 16
        %v1436 = vshrl.u32 %v1431, 16
        %vm1437 = vc.u32 %v1429, %v1433
        %v1438 = vsel %vm1437, 1, 0
        %v1439 = vadd.s32 %v1429, %v1433
        %v1440 = vadd.s32 %v1432, %v1438
        %vm1441 = vc.u32 %v1439, %v1435
        %v1442 = vsel %vm1441, 1, 0
        %v1443 = vadd.s32 %v1439, %v1435
        %v1444 = vadd.s32 %v1440, %v1442
        %v1445 = vadd.s32 %v1444, %v1434
        %v1446 = vadd.s32 %v1445, %v1436
        %v1447 = vand.u32 %v1424, 65535
        %v1448 = vshrl.u32 %v1424, 16
        %v1449 = vand.u32 %v1419, 65535
        %v1450 = vshrl.u32 %v1419, 16
        %v1451 = vmul.u32 %v1447, %v1449
        %v1452 = vmul.u32 %v1447, %v1450
        %v1453 = vmul.u32 %v1448, %v1449
        %v1454 = vmul.u32 %v1448, %v1450
        %v1455 = vshll.u32 %v1452, 16
        %v1456 = vshrl.u32 %v1452, 16
        %v1457 = vshll.u32 %v1453, 16
        %v1458 = vshrl.u32 %v1453, 16
        %vm1459 = vc.u32 %v1451, %v1455
        %v1460 = vsel %vm1459, 1, 0
        %v1461 = vadd.s32 %v1451, %v1455
        %v1462 = vadd.s32 %v1454, %v1460
        %vm1463 = vc.u32 %v1461, %v1457
        %v1464 = vsel %vm1463, 1, 0
        %v1465 = vadd.s32 %v1461, %v1457
        %v1466 = vadd.s32 %v1462, %v1464
        %v1467 = vadd.s32 %v1466, %v1456
        %v1468 = vadd.s32 %v1467, %v1458
        %v1469 = vmul.u32 %v1424, %v1415
        %v1470 = vadd.s32 %v1446, %v1465
        %vm1471 = vc.u32 %v1446, %v1465
        %v1472 = vadd.s32 %v1468, 1
        %v1473 = vsel %vm1471, %v1472, %v1468
        %v1474 = vadd.s32 %v1469, %v1473
        %v1475 = vadd.s32 %v1474, 536870912
        %v1476 = vshrl.u32 %v1475, 30
        %v1477 = vshll.u32 %v1476, 30
        %v1478 = vsub.s32 %v1474, %v1477
        %vm1479 = vcmp.lt.s32.totalorder %v1478, 0
        %v1480 = vsub.s32 0, %v1478
        %v1481 = vsel %vm1479, %v1480, %v1478
        %v1482 = vclz %v1481
        %v1483 = vsub.s32 %v1482, 2
        %vm1484 = vcmp.gt.s32.totalorder 0, %v1483
        %v1485 = vsel %vm1484, 0, %v1483
        %v1486 = vsub.s32 32, %v1485
        %v1487 = vshll.u32 %v1478, %v1485
        %v1488 = vshrl.u32 %v1470, %v1486
        %v1489 = vor.u32 %v1487, %v1488
        %v1490 = vsub.s32 4294967266, %v1485
        %v1491 = vadd.s32 %v1490, 127
        %v1492 = vshll.u32 %v1491, 23
        %v1493 = vor.u32 4788187, %v1492
        %v1494 = vand.u32 2147483647, %v1493
        %v1496 = vcvt.s32.f32 %v1489
        %v1497 = vmul.f32 %v1496, %v1494
        %v1498 = vxor.u32 %v1497, 2147483648
        %v1499 = vsel %vm1378, %v1498, %v1497
        %v1500 = vsub.s32 4, %v1476
        %v1501 = vsel %vm1378, %v1500, %v1476
        %v1502 = vsel %vm1377, %v290, %v1499
        %v1503 = vsel %vm1377, 0, %v1501
        %v1504 = vmul.f32 %v1502, %v1502
        %v1505 = vmul.f32 %v1504, -0.001358992
        %v1506 = vadd.f32 %v1505, 0.041655596
        %v1507 = vmul.f32 %v1504, %v1506
        %v1508 = vadd.f32 %v1507, -0.4999988
        %v1509 = vmul.f32 %v1504, %v1508
        %v1510 = vadd.f32 1.0, %v1509
        %v1511 = vmul.f32 %v1502, %v1502
        %v1512 = vmul.f32 %v1511, -0.00019511016
        %v1513 = vadd.f32 %v1512, 0.008332121
        %v1514 = vmul.f32 %v1511, %v1513
        %v1515 = vadd.f32 %v1514, -0.16666654
        %v1516 = vmul.f32 %v1511, %v1515
        %v1517 = vadd.f32 %v1516, 1.0
        %v1518 = vmul.f32 %v1517, %v1502
        %vm1519 = vweird.f32 %v290
        %v1520 = vadd.s32 %v1503, 3
        %v1521 = vand.u32 %v1520, 3
        %vm1522 = vcmp.lt.s32.totalorder %v1521, 2
        %vm1523 = vcmp.eq.s32.totalorder %v1521, 0
        %v1524 = vxor.u32 %v1518, 2147483648
        %v1525 = vsel %vm1523, %v1510, %v1524
        %vm1526 = vcmp.eq.s32.totalorder %v1521, 2
        %v1527 = vxor.u32 %v1510, 2147483648
        %v1528 = vsel %vm1526, %v1527, %v1518
        %v1529 = vsel %vm1522, %v1525, %v1528
        %v1530 = vsel %vm1519, nan, %v1529
        %1531 = vst [vmem:[%s162] sm:$0xff] %v445
        %1532 = vst [vmem:[%s162 + $0x8] sm:$0xff] %v600
        %1533 = vst [vmem:[%s162 + $0x10] sm:$0xff] %v755
        %1534 = vst [vmem:[%s162 + $0x18] sm:$0xff] %v910
        %1535 = vst [vmem:[%s162 + $0x20] sm:$0xff] %v1065
        %1536 = vst [vmem:[%s162 + $0x28] sm:$0xff] %v1220
        %1537 = vst [vmem:[%s162 + $0x30] sm:$0xff] %v1375
        %1538 = vst [vmem:[%s162 + $0x38] sm:$0xff] %v1530
        %s1539 = sand.u32 %s102, 1
        %s1540 = scalar_lea.sflag [#allocation3], %s1539
        %s1541 = sand.u32 %s102, 1
        %s1542 = smul.addr %s1541, 64
        %s1543 = scalar_lea.vmem [#allocation2], %s1542
        // Predicated region
        $region33: #{tpu_custom_call.1} parent=31 // pred_check
          %p1544 = pneg %p112
        $region34: #{tpu_custom_call.1} parent=31 // pred_check_branch
          %1546 = sbr.rel (%p1544) target = $region36
        $region35: #{tpu_custom_call.1} parent=31 // pred_region
          %s1547 = smul.u32 2, %s22
          %1549 = vsyncadd %s1540, 0
          %s1550 = smul.addr %s21, 8
          %s1551 = sadd.s32 %s1547, %s1550
          %s1552 = smul.addr %s1551, 8
          %s1553 = scalar_lea.hbm %s3, %s1552
          %s1554 = sshll.u32 %s1543, 4
          %s1555 = int_to_ptr.vmem [resolvable:$true] %s1554
          %s1556 = sshll.u32 %s1553, 4
          %s1557 = int_to_ptr.hbm [resolvable:$true] %s1556
          %1562 = dma.vmem_to_hbm [thread:$0]  %s1555, 1024, %s1557, %s1540, 256, 256, 16
        $region36: #{tpu_custom_call.1} parent=31 // pred_fallthru
          _
      $region32: #{tpu_custom_call.1} parent=5 // pred_fallthru
        _
      %p1563 = scmp.le.s32.totalorder 2, %s12
      // Predicated region
      $region37: #{tpu_custom_call.1} parent=5 // pred_check
        %p1564 = pneg %p1563
      $region38: #{tpu_custom_call.1} parent=5 // pred_check_branch
        %1566 = sbr.rel (%p1564) target = $region40
      $region39: #{tpu_custom_call.1} parent=5 // pred_region
        %s1567 = ssub.s32 %s12, 2
        // Predicated region
        $region41: #{tpu_custom_call.1} parent=39 // pred_check
          %p1568 = pneg %p118
        $region42: #{tpu_custom_call.1} parent=39 // pred_check_branch
          %1570 = sbr.rel (%p1568) target = $region44
        $region43: #{tpu_custom_call.1} parent=39 // pred_region
          %s1571 = sand.u32 %s103, 1
          %s1572 = scalar_lea.sflag [#allocation3], %s1571
          %s1573 = sand.u32 %s103, 1
          %s1574 = smul.addr %s1573, 64
          %s1575 = scalar_lea.vmem [#allocation2], %s1574
          %1577 = dma.done %s1572, 1024
        $region44: #{tpu_custom_call.1} parent=39 // pred_fallthru
          _
      $region40: #{tpu_custom_call.1} parent=5 // pred_fallthru
        _
    $region6: #{tpu_custom_call.1} parent=1 // loop_footer
      %s16 = sadd.s32 1, %s12
    $region7: #{tpu_custom_call.1} parent=1 // loop_footer_branch
      %11 = sbr.rel target = $region3
    $region8: #{tpu_custom_call.1} parent=1 // loop_exit
      _
    %1578 = vsyncpa [#allocation3], 1
    %s1579 = scalar_lea.sflag [#allocation3], 1
    %1580 = vsyncpa %s1579, 1

</llo_original>
